<compile_context>
chip_gen: v7x
topology: tpu7x:2x2x1
jax: 0.10.0
libtpu: 0.0.40
codegen_flags: <defaults>
</compile_context>

<pallas_src>
import functools

import jax
import jax.numpy as jnp
from jax.experimental import pallas as pl
from jax.experimental.pallas import tpu as pltpu


def _round_up(a: int, b: int) -> int:
    return (a + b - 1) // b * b


def _gated_agg_kernel(bidx_ref, x_ref, w_ref, out_ref, m_ref, l_ref, *, total_rows):
    """One node-tile step of gated pooling with an online segment softmax.

    bidx_ref: (1, TV) int32  graph id per node (== B for padded tail slots)
    x_ref:    (TV, D) float  node-feature tile (ragged tail masked in-kernel)
    w_ref:    (8, D)  f32    gate weight row, replicated to 8 sublanes for the MXU
    out_ref:  (B, D)  f32    pooled output; doubles as the running accumulator
    m_ref:    (B, 1)  f32    running per-graph max of scores
    l_ref:    (B, 1)  f32    running per-graph sum of exp(score - max)
    """
    t = pl.program_id(0)
    nt = pl.num_programs(0)
    TV = x_ref.shape[0]
    B = out_ref.shape[0]
    NEG = jnp.float32(-1e30)          # finite "-inf" sentinel: keeps exp() NaN-free

    @pl.when(t == 0)
    def _init():
        m_ref[...] = jnp.full_like(m_ref, NEG)
        l_ref[...] = jnp.zeros_like(l_ref)
        out_ref[...] = jnp.zeros_like(out_ref)

    x = x_ref[...].astype(jnp.float32)                                    # (TV, D)
    if total_rows % TV != 0:
        # Ragged tail only (static Python check): rows past V hold undefined VMEM
        # -> zero them before the MXU contraction (0 * NaN would poison the
        # accumulator). Tile-aligned inputs pay nothing for this.
        rows = jax.lax.broadcasted_iota(jnp.int32, (TV, 1), 0) + t * TV
        x = jnp.where(rows < total_rows, x, 0.0)

    # Gate scores as a lane-major row: one skinny MXU matmul (q @ k^T form);
    # only sublane 0 of the replicated weight is kept.  Bias cancels in softmax.
    s = jax.lax.dot_general(w_ref[...], x, (((1,), (1,)), ((), ())),
                            preferred_element_type=jnp.float32)[0:1, :]   # (1, TV)

    # (B, TV) membership plane rebuilt in registers from the streamed int32 ids
    # (4 bytes/node of HBM traffic; padded tail ids == B match no graph row).
    gid = jax.lax.broadcasted_iota(jnp.int32, (B, TV), 0)
    mask = bidx_ref[...] == gid                                           # (B, TV)

    # --- online segment softmax; every per-graph stat is a (B, 1) column -----
    m_prev = m_ref[...]                                                   # (B, 1)
    m_tile = jnp.max(jnp.where(mask, s, NEG), axis=1, keepdims=True)      # (B, 1)
    m_new = jnp.maximum(m_prev, m_tile)
    c = jnp.exp(m_prev - m_new)                                           # (B, 1)

    # E[b, v] = exp(s_v - m_new_b) for v in graph b, else 0.  Its lane-sum is
    # the tile's denominator; E @ x is the tile's weighted scatter-sum (single
    # MXU matmul, no transposed copies).  exp() may overflow to +inf for graphs
    # whose running max is still the NEG sentinel; the select discards it.
    e = jnp.where(mask, jnp.exp(s - m_new), 0.0)                          # (B, TV)

    m_ref[...] = m_new
    l_ref[...] = c * l_ref[...] + jnp.sum(e, axis=1, keepdims=True)
    # TODO(synk): on v5e, skip the c-rescale RMW when no per-graph max changed
    # (pl.when on a scalar any(m_tile > m_prev)) to ease the single vst slot.
    out_ref[...] = c * out_ref[...] + jnp.dot(e, x, preferred_element_type=jnp.float32)

    @pl.when(t == nt - 1)
    def _finalize():
        l = l_ref[...]
        inv = jnp.where(l > 0.0, 1.0 / l, 0.0)        # empty graphs -> zero rows
        out_ref[...] = out_ref[...] * inv


def gated_aggregation(node_feats, batch_index, num_graphs, weight, bias=None,
                      *, tile_v=None, interpret=False):
    """node_feats: (V, D); batch_index: (V,) int32 in [0, num_graphs); weight: (1, D)."""
    V, D = node_feats.shape
    B = int(num_graphs)

    # D-aware tile: ~2 MiB of f32 features per pipeline buffer, >= 512 rows,
    # capped at 2048, multiple of 128 (keeps the graph-id row block lane-aligned).
    if tile_v is None:
        tile_v = min(max(512, (2 * 1024 * 1024) // (4 * D)), 2048)
    tv = _round_up(min(int(tile_v), _round_up(V, 128)), 128)
    nt = pl.cdiv(V, tv)
    Vp = nt * tv

    # Only the 4-byte/node graph-id row is padded (id == B matches no graph);
    # node_feats itself is streamed unpadded and in its original dtype.
    bidx = batch_index.astype(jnp.int32).reshape(1, V)
    if Vp != V:
        bidx = jnp.pad(bidx, ((0, 0), (0, Vp - V)), constant_values=B)

    # Gate weight replicated to 8 sublanes so the score-matmul LHS is tile-aligned.
    w8 = jnp.broadcast_to(weight.reshape(1, D).astype(jnp.float32), (8, D))
    # NOTE: the Linear bias is NOT passed to the kernel -- it cancels exactly
    # inside the per-graph softmax: exp(s+b - (max+b)) == exp(s-max).
    del bias

    vmem_est = (2 * tv * D * 4        # double-buffered feature tile
                + 2 * tv * 4          # double-buffered graph-id row
                + 8 * D * 4           # gate weight
                + B * D * 4           # resident output accumulator
                + 4 * B * tv * 4      # (B, TV) mask / E intermediates headroom
                + 2 * B * 4)          # m / l columns
    vmem_limit = int(min(max(32 * 1024 * 1024, 2 * vmem_est), 56 * 1024 * 1024))

    kernel = functools.partial(_gated_agg_kernel, total_rows=V)
    return pl.pallas_call(
        kernel,
        out_shape=jax.ShapeDtypeStruct((B, D), jnp.float32),
        grid_spec=pltpu.PrefetchScalarGridSpec(
            num_scalar_prefetch=0,
            grid=(nt,),
            in_specs=[
                pl.BlockSpec((1, tv), lambda t: (0, t)),    # graph-id row tile
                # TODO(synk): add pipeline_mode=pl.Buffered(3) on the x spec if
                # the DMA is still exposed on v5e after the larger tiles.
                pl.BlockSpec((tv, D), lambda t: (t, 0)),    # node-feature tile
                pl.BlockSpec((8, D), lambda t: (0, 0)),     # gate weight (resident)
            ],
            out_specs=pl.BlockSpec((B, D), lambda t: (0, 0)),  # accumulator block
            scratch_shapes=[
                pltpu.VMEM((B, 1), jnp.float32),   # running per-graph max
                pltpu.VMEM((B, 1), jnp.float32),   # running per-graph sum-of-exp
            ],
        ),
        compiler_params=pltpu.CompilerParams(
            dimension_semantics=("arbitrary",),    # node axis carries the accumulator
            vmem_limit_bytes=vmem_limit,
        ),
        cost_estimate=pl.CostEstimate(
            flops=2 * Vp * B * D + 2 * Vp * D + 6 * Vp * B,
            transcendentals=Vp * B + nt * B,
            bytes_accessed=4 * (V * D + Vp + 8 * D + B * D),
        ),
        interpret=interpret,
    )(bidx, node_feats, w8)


def _reference(node_feats, batch_index, num_graphs, weight, bias):
    scores = node_feats @ weight.reshape(-1) + bias[0]                    # (V,)
    seg_max = jax.ops.segment_max(scores, batch_index, num_segments=num_graphs)
    e = jnp.exp(scores - seg_max[batch_index])
    denom = jax.ops.segment_sum(e, batch_index, num_segments=num_graphs)
    alpha = e / denom[batch_index]
    return jax.ops.segment_sum(alpha[:, None] * node_feats, batch_index,
                               num_segments=num_graphs)


if __name__ == "__main__":
    key = jax.random.PRNGKey(0)
    k_x, k_w, k_b, k_x2 = jax.random.split(key, 4)

    # Case 1: V=640 nodes, D=32 features, B=8 equal contiguous graphs; tile_v=128
    # so the online segment softmax runs across 5 grid steps.
    V, D, B = 640, 32, 8
    node_feats = jax.random.normal(k_x, (V, D), dtype=jnp.float32)
    batch_index = jnp.repeat(jnp.arange(B, dtype=jnp.int32), V // B)

    bound = 1.0 / jnp.sqrt(jnp.float32(D))      # deterministic nn.Linear(D, 1)-style init
    weight = jax.random.uniform(k_w, (1, D), jnp.float32, -bound, bound)
    bias = jax.random.uniform(k_b, (1,), jnp.float32, -bound, bound)

    out = jax.block_until_ready(
        gated_aggregation(node_feats, batch_index, B, weight, bias, tile_v=128))
    ref = _reference(node_feats, batch_index, B, weight, bias)
    assert out.shape == (B, D)
    assert jnp.allclose(out, ref, atol=1e-5, rtol=1e-4), (out, ref)

    # Case 2: ragged graph sizes and V not a multiple of the tile (exercises the
    # padded graph-id row and the in-kernel ragged-tail masking of x).
    V2, B2 = 500, 3
    x2 = jax.random.normal(k_x2, (V2, D), dtype=jnp.float32)
    bidx2 = jnp.concatenate([
        jnp.zeros((123,), jnp.int32),
        jnp.ones((256,), jnp.int32),
        jnp.full((121,), 2, jnp.int32),
    ])
    out2 = jax.block_until_ready(
        gated_aggregation(x2, bidx2, B2, weight, bias, tile_v=128))
    ref2 = _reference(x2, bidx2, B2, weight, bias)
    assert out2.shape == (B2, D)
    assert jnp.allclose(out2, ref2, atol=1e-5, rtol=1e-4), (out2, ref2)

    print("KERNEL_OK")
</pallas_src>

<mosaic_0001>
module attributes {stable_mosaic.version = 11 : i64} {
  func.func @_gated_agg_kernel(%arg0: i32, %arg1: memref<1x128xi32, #tpu.memory_space<vmem>>, %arg2: memref<128x32xf32, #tpu.memory_space<vmem>>, %arg3: memref<8x32xf32, #tpu.memory_space<vmem>>, %arg4: memref<8x32xf32, #tpu.memory_space<vmem>>, %arg5: memref<8x1xf32, #tpu.memory_space<vmem>>, %arg6: memref<8x1xf32, #tpu.memory_space<vmem>>) attributes {dimension_semantics = [#tpu.dimension_semantics<arbitrary>], iteration_bounds = array<i64: 5>, scalar_prefetch = 0 : i64, scratch_operands = 2 : i64, tpu.core_type = #tpu.core_type<tc>, window_params = [{transform_indices = @transform_0, window_bounds = array<i64: 1, 128>}, {transform_indices = @transform_1, window_bounds = array<i64: 128, 32>}, {pipeline_mode = #tpu.pipeline_mode<synchronous>, transform_indices = @transform_2, window_bounds = array<i64: 8, 32>}, {pipeline_mode = #tpu.pipeline_mode<synchronous>, transform_indices = @transform_3, window_bounds = array<i64: 8, 32>}]} {
    %c0_i32 = arith.constant 0 : i32
    %0 = arith.cmpi eq, %arg0, %c0_i32 : i32
    %1 = arith.extui %0 : i1 to i32
    %cst = arith.constant -1.000000e+30 : f32
    %c0_i32_0 = arith.constant 0 : i32
    %2 = arith.cmpi ne, %1, %c0_i32_0 : i32
    scf.if %2 {
      %43 = vector.broadcast %cst : f32 to vector<8x1xf32>
      %c0_25 = arith.constant 0 : index
      %c0_26 = arith.constant 0 : index
      %44 = vector.load %arg5[%c0_25, %c0_26] : memref<8x1xf32, #tpu.memory_space<vmem>>, vector<8x1xf32>
      tpu.vector_store %arg5[%c0_25, %c0_26], %43 {strides = array<i32>} : memref<8x1xf32, #tpu.memory_space<vmem>>, vector<8x1xf32>,
      %cst_27 = arith.constant 0.000000e+00 : f32
      %45 = vector.broadcast %cst_27 : f32 to vector<8x1xf32>
      %c0_28 = arith.constant 0 : index
      %c0_29 = arith.constant 0 : index
      %46 = vector.load %arg6[%c0_28, %c0_29] : memref<8x1xf32, #tpu.memory_space<vmem>>, vector<8x1xf32>
      tpu.vector_store %arg6[%c0_28, %c0_29], %45 {strides = array<i32>} : memref<8x1xf32, #tpu.memory_space<vmem>>, vector<8x1xf32>,
      %cst_30 = arith.constant 0.000000e+00 : f32
      %47 = vector.broadcast %cst_30 : f32 to vector<8x32xf32>
      %c0_31 = arith.constant 0 : index
      %c0_32 = arith.constant 0 : index
      %48 = vector.load %arg4[%c0_31, %c0_32] : memref<8x32xf32, #tpu.memory_space<vmem>>, vector<8x32xf32>
      tpu.vector_store %arg4[%c0_31, %c0_32], %47 {strides = array<i32>} : memref<8x32xf32, #tpu.memory_space<vmem>>, vector<8x32xf32>,
    } else {
    }
    %c0 = arith.constant 0 : index
    %c0_1 = arith.constant 0 : index
    %3 = vector.load %arg2[%c0, %c0_1] : memref<128x32xf32, #tpu.memory_space<vmem>>, vector<128x32xf32>
    %c0_2 = arith.constant 0 : index
    %c0_3 = arith.constant 0 : index
    %4 = vector.load %arg3[%c0_2, %c0_3] : memref<8x32xf32, #tpu.memory_space<vmem>>, vector<8x32xf32>
    %cst_4 = arith.constant dense<0.000000e+00> : vector<8x128xf32>
    %5 = tpu.matmul %4, %3, %cst_4 {dimension_numbers = #tpu.dot_dimension_numbers<[1], [1], [0], [0], [0, 0, 1, 0], [], []>} : vector<8x32xf32>, vector<128x32xf32>, vector<8x128xf32> -> vector<8x128xf32>
    %6 = vector.extract_strided_slice %5 {offsets = [0, 0], sizes = [1, 128], strides = [1, 1]} : vector<8x128xf32> to vector<1x128xf32>
    %7 = tpu.iota {dimensions = array<i32: 0>} : vector<8x128xi32>
    %c0_5 = arith.constant 0 : index
    %c0_6 = arith.constant 0 : index
    %8 = vector.load %arg1[%c0_5, %c0_6] : memref<1x128xi32, #tpu.memory_space<vmem>>, vector<1x128xi32>
    %9 = vector.broadcast %8 : vector<1x128xi32> to vector<8x128xi32>
    %10 = arith.cmpi eq, %9, %7 : vector<8x128xi32>
    %c0_7 = arith.constant 0 : index
    %c0_8 = arith.constant 0 : index
    %11 = vector.load %arg5[%c0_7, %c0_8] : memref<8x1xf32, #tpu.memory_space<vmem>>, vector<8x1xf32>
    %cst_9 = arith.constant -1.000000e+30 : f32
    %12 = vector.shape_cast %6 : vector<1x128xf32> to vector<1x128xf32>
    %13 = vector.broadcast %12 : vector<1x128xf32> to vector<8x128xf32>
    %14 = vector.broadcast %cst_9 : f32 to vector<8x128xf32>
    %15 = arith.select %10, %13, %14 : vector<8x128xi1>, vector<8x128xf32>
    %cst_10 = arith.constant dense<0xFF800000> : vector<8xf32>
    %16 = vector.multi_reduction <maximumf>, %15, %cst_10 [1] : vector<8x128xf32> to vector<8xf32>
    %17 = vector.shape_cast %16 : vector<8xf32> to vector<8x1xf32>
    %18 = arith.maximumf %11, %17 : vector<8x1xf32>
    %19 = arith.subf %11, %18 : vector<8x1xf32>
    %20 = math.exp %19 : vector<8x1xf32>
    %21 = vector.broadcast %6 : vector<1x128xf32> to vector<8x128xf32>
    %22 = vector.broadcast %18 : vector<8x1xf32> to vector<8x128xf32>
    %23 = arith.subf %21, %22 : vector<8x128xf32>
    %24 = math.exp %23 : vector<8x128xf32>
    %cst_11 = arith.constant 0.000000e+00 : f32
    %25 = vector.broadcast %cst_11 : f32 to vector<8x128xf32>
    %26 = arith.select %10, %24, %25 : vector<8x128xi1>, vector<8x128xf32>
    %c0_12 = arith.constant 0 : index
    %c0_13 = arith.constant 0 : index
    %27 = vector.load %arg5[%c0_12, %c0_13] : memref<8x1xf32, #tpu.memory_space<vmem>>, vector<8x1xf32>
    tpu.vector_store %arg5[%c0_12, %c0_13], %18 {strides = array<i32>} : memref<8x1xf32, #tpu.memory_space<vmem>>, vector<8x1xf32>,
    %c0_14 = arith.constant 0 : index
    %c0_15 = arith.constant 0 : index
    %28 = vector.load %arg6[%c0_14, %c0_15] : memref<8x1xf32, #tpu.memory_space<vmem>>, vector<8x1xf32>
    %29 = arith.mulf %20, %28 : vector<8x1xf32>
    %cst_16 = arith.constant dense<0.000000e+00> : vector<8xf32>
    %30 = vector.multi_reduction <add>, %26, %cst_16 [1] : vector<8x128xf32> to vector<8xf32>
    %31 = vector.shape_cast %30 : vector<8xf32> to vector<8x1xf32>
    %32 = arith.addf %29, %31 : vector<8x1xf32>
    %c0_17 = arith.constant 0 : index
    %c0_18 = arith.constant 0 : index
    %33 = vector.load %arg6[%c0_17, %c0_18] : memref<8x1xf32, #tpu.memory_space<vmem>>, vector<8x1xf32>
    tpu.vector_store %arg6[%c0_17, %c0_18], %32 {strides = array<i32>} : memref<8x1xf32, #tpu.memory_space<vmem>>, vector<8x1xf32>,
    %c0_19 = arith.constant 0 : index
    %c0_20 = arith.constant 0 : index
    %34 = vector.load %arg4[%c0_19, %c0_20] : memref<8x32xf32, #tpu.memory_space<vmem>>, vector<8x32xf32>
    %35 = vector.broadcast %20 : vector<8x1xf32> to vector<8x32xf32>
    %36 = arith.mulf %35, %34 : vector<8x32xf32>
    %cst_21 = arith.constant dense<0.000000e+00> : vector<8x32xf32>
    %37 = tpu.matmul %26, %3, %cst_21 {dimension_numbers = #tpu.dot_dimension_numbers<[1], [0], [0], [1], [0, 0, 1, 1], [], []>} : vector<8x128xf32>, vector<128x32xf32>, vector<8x32xf32> -> vector<8x32xf32>
    %38 = arith.addf %36, %37 : vector<8x32xf32>
    %c0_22 = arith.constant 0 : index
    %c0_23 = arith.constant 0 : index
    %39 = vector.load %arg4[%c0_22, %c0_23] : memref<8x32xf32, #tpu.memory_space<vmem>>, vector<8x32xf32>
    tpu.vector_store %arg4[%c0_22, %c0_23], %38 {strides = array<i32>} : memref<8x32xf32, #tpu.memory_space<vmem>>, vector<8x32xf32>,
    %c4_i32 = arith.constant 4 : i32
    %40 = arith.cmpi eq, %arg0, %c4_i32 : i32
    %41 = arith.extui %40 : i1 to i32
    %c0_i32_24 = arith.constant 0 : i32
    %42 = arith.cmpi ne, %41, %c0_i32_24 : i32
    scf.if %42 {
      %c0_25 = arith.constant 0 : index
      %c0_26 = arith.constant 0 : index
      %43 = vector.load %arg6[%c0_25, %c0_26] : memref<8x1xf32, #tpu.memory_space<vmem>>, vector<8x1xf32>
      %cst_27 = arith.constant 0.000000e+00 : f32
      %44 = vector.broadcast %cst_27 : f32 to vector<8x1xf32>
      %45 = arith.cmpf ogt, %43, %44 : vector<8x1xf32>
      %cst_28 = arith.constant 1.000000e+00 : f32
      %46 = vector.broadcast %cst_28 : f32 to vector<8x1xf32>
      %47 = arith.divf %46, %43 : vector<8x1xf32>
      %cst_29 = arith.constant 0.000000e+00 : f32
      %48 = vector.broadcast %cst_29 : f32 to vector<8x1xf32>
      %49 = arith.select %45, %47, %48 : vector<8x1xi1>, vector<8x1xf32>
      %c0_30 = arith.constant 0 : index
      %c0_31 = arith.constant 0 : index
      %50 = vector.load %arg4[%c0_30, %c0_31] : memref<8x32xf32, #tpu.memory_space<vmem>>, vector<8x32xf32>
      %51 = vector.broadcast %49 : vector<8x1xf32> to vector<8x32xf32>
      %52 = arith.mulf %50, %51 : vector<8x32xf32>
      %c0_32 = arith.constant 0 : index
      %c0_33 = arith.constant 0 : index
      %53 = vector.load %arg4[%c0_32, %c0_33] : memref<8x32xf32, #tpu.memory_space<vmem>>, vector<8x32xf32>
      tpu.vector_store %arg4[%c0_32, %c0_33], %52 {strides = array<i32>} : memref<8x32xf32, #tpu.memory_space<vmem>>, vector<8x32xf32>,
    } else {
    }
    return
  }
  func.func @transform_0(%arg0: i32) -> (i32, i32) {
    %c0_i32 = arith.constant 0 : i32
    %c0_i32_0 = arith.constant 0 : i32
    return %c0_i32, %arg0 : i32, i32
  }
  func.func @transform_1(%arg0: i32) -> (i32, i32) {
    %c0_i32 = arith.constant 0 : i32
    %c0_i32_0 = arith.constant 0 : i32
    return %arg0, %c0_i32 : i32, i32
  }
  func.func @transform_2(%arg0: i32) -> (i32, i32) {
    %c0_i32 = arith.constant 0 : i32
    %c0_i32_0 = arith.constant 0 : i32
    %c0_i32_1 = arith.constant 0 : i32
    return %c0_i32, %c0_i32_0 : i32, i32
  }
  func.func @transform_3(%arg0: i32) -> (i32, i32) {
    %c0_i32 = arith.constant 0 : i32
    %c0_i32_0 = arith.constant 0 : i32
    %c0_i32_1 = arith.constant 0 : i32
    return %c0_i32, %c0_i32_0 : i32, i32
  }
}

</mosaic_0001>

<llo_original>
// kernel: tpu_custom_call.1
$region0: #{tpu_custom_call.1}
  #allocation0 [shape = 'u32[]', space=smem, size = 0x4, offset = 0x4, fixed_abs, tag = 'smem constant byte address 0x4 - core index']
  #allocation1 [shape = 'u32[144,128]{1,0:T(1,128)}', space=vmem, size = 0x12000, scoped, tag = 'internal scratch']
  #allocation2 [shape = 'f32[8,1]{1,0:T(8,128)}', space=vmem, size = 0x1000, scoped, tag = 'scratch operand']
  #allocation3 [shape = 'f32[8,1]{1,0:T(8,128)}', space=vmem, size = 0x1000, scoped, tag = 'scratch operand']
  %s0 = inlined_call_operand.vmem [shape: s32[1,640], index: 0, kind: input, shape index: {}]
  %s1 = inlined_call_operand.vmem [shape: f32[640,32], index: 1, kind: input, shape index: {}]
  %s2 = inlined_call_operand.vmem [shape: f32[8,32], index: 2, kind: input, shape index: {}]
  %s3 = inlined_call_operand.hbm [shape: f32[8,32], index: 3, kind: output, shape index: {}]
  %s4 = sld [smem:[#allocation0]]
  $region53: #{tpu_custom_call.1} parent=0
    _
  %s6 = ssub.s32 1, %s4
  %s7 = scalar_select 0, %s6, %s4
  $region1: #{tpu_custom_call.1} parent=0
    #allocation4 [shape = 'u8[4096]{0}', space=vmem, size = 0x1000, scoped, tag = 'output window, operand 0, single buffered']
    #allocation5 [shape = 's32[2]{0}', space=sflag, size = 0x8, scoped, tag = 'scoped memory for tpu_custom_call.1']
    %8 = vsyncpa [#allocation5], 0
    loop: start=0, step=1, limit=7
    $region2: #{tpu_custom_call.1} parent=1 // loop_pre_header
      _
    $region3: #{tpu_custom_call.1} parent=1 // loop_header
      %s10 = sphi 0, %s14
      %p11 = scmp.ge.s32.totalorder %s10, 7
      %s20 = sphi 0, %s22
      %s23 = sphi 0, %s20
      %s24 = sphi 0, %s23
      %s40 = sphi 0, %s24
      %s46 = sphi 0, %s48
      %s49 = sphi 0, %s46
      %s50 = sphi 0, %s49
      %s66 = sphi 0, %s50
      %s70 = sphi 0, %s70
      %s72 = sphi 0, %s70
      %s73 = sphi 0, %s72
      %s87 = sphi 0, %s73
      %s91 = sphi 0, %s91
      %s93 = sphi 0, %s91
      %s94 = sphi 0, %s93
      %s108 = sphi 0, %s94
    $region4: #{tpu_custom_call.1} parent=1 // loop_header_branch
      %13 = sbr.rel (%p11) target = $region8
    $region5: #{tpu_custom_call.1} parent=1 // loop_body
      %s15 = ssub.s32 %s10, 1
      %s16 = ssub.s32 %s10, 2
      %s17 = sadd.s32 %s10, 1
      %s18 = ssub.s32 %s10, %s17
      %p19 = scmp.eq.s32.totalorder %s18, 0
      %s21 = sadd.s32 %s20, 1
      %s22 = scalar_select %p19, %s20, %s21
      %p25 = pneg %p19
      %p26 = scmp.eq.s32.totalorder %s10, 4
      %p27 = por %p25, %p26
      %p28 = scmp.ne.s32.totalorder %s20, %s23
      %p29 = scmp.eq.s32.totalorder %s10, 0
      %p30 = por %p28, %p29
      %p31 = scmp.ne.s32.totalorder %s20, %s23
      %p32 = scmp.eq.s32.totalorder %s15, 4
      %p33 = por %p31, %p32
      %p34 = scmp.ne.s32.totalorder %s23, %s24
      %p35 = scmp.eq.s32.totalorder %s15, 0
      %p36 = por %p34, %p35
      %p37 = scmp.ne.s32.totalorder %s23, %s24
      %p38 = scmp.eq.s32.totalorder %s16, 4
      %p39 = por %p37, %p38
      %p41 = scmp.ne.s32.totalorder %s24, %s40
      %p42 = scmp.eq.s32.totalorder %s16, 0
      %p43 = por %p41, %p42
      %s44 = ssub.s32 %s10, %s17
      %p45 = scmp.eq.s32.totalorder %s44, 0
      %s47 = sadd.s32 %s46, 1
      %s48 = scalar_select %p45, %s46, %s47
      %p51 = pneg %p45
      %p52 = scmp.eq.s32.totalorder %s10, 4
      %p53 = por %p51, %p52
      %p54 = scmp.ne.s32.totalorder %s46, %s49
      %p55 = scmp.eq.s32.totalorder %s10, 0
      %p56 = por %p54, %p55
      %p57 = scmp.ne.s32.totalorder %s46, %s49
      %p58 = scmp.eq.s32.totalorder %s15, 4
      %p59 = por %p57, %p58
      %p60 = scmp.ne.s32.totalorder %s49, %s50
      %p61 = scmp.eq.s32.totalorder %s15, 0
      %p62 = por %p60, %p61
      %p63 = scmp.ne.s32.totalorder %s49, %s50
      %p64 = scmp.eq.s32.totalorder %s16, 4
      %p65 = por %p63, %p64
      %p67 = scmp.ne.s32.totalorder %s50, %s66
      %p68 = scmp.eq.s32.totalorder %s16, 0
      %p69 = por %p67, %p68
      %s71 = sadd.s32 %s70, 1
      %p74 = scmp.eq.s32.totalorder %s10, 4
      %p75 = scmp.ne.s32.totalorder %s70, %s72
      %p76 = scmp.eq.s32.totalorder %s10, 0
      %p77 = por %p75, %p76
      %p78 = scmp.ne.s32.totalorder %s70, %s72
      %p79 = scmp.eq.s32.totalorder %s15, 4
      %p80 = por %p78, %p79
      %p81 = scmp.ne.s32.totalorder %s72, %s73
      %p82 = scmp.eq.s32.totalorder %s15, 0
      %p83 = por %p81, %p82
      %p84 = scmp.ne.s32.totalorder %s72, %s73
      %p85 = scmp.eq.s32.totalorder %s16, 4
      %p86 = por %p84, %p85
      %p88 = scmp.ne.s32.totalorder %s73, %s87
      %p89 = scmp.eq.s32.totalorder %s16, 0
      %p90 = por %p88, %p89
      %s92 = sadd.s32 %s91, 1
      %p95 = scmp.eq.s32.totalorder %s10, 4
      %p96 = scmp.ne.s32.totalorder %s91, %s93
      %p97 = scmp.eq.s32.totalorder %s10, 0
      %p98 = por %p96, %p97
      %p99 = scmp.ne.s32.totalorder %s91, %s93
      %p100 = scmp.eq.s32.totalorder %s15, 4
      %p101 = por %p99, %p100
      %p102 = scmp.ne.s32.totalorder %s93, %s94
      %p103 = scmp.eq.s32.totalorder %s15, 0
      %p104 = por %p102, %p103
      %p105 = scmp.ne.s32.totalorder %s93, %s94
      %p106 = scmp.eq.s32.totalorder %s16, 4
      %p107 = por %p105, %p106
      %p109 = scmp.ne.s32.totalorder %s94, %s108
      %p110 = scmp.eq.s32.totalorder %s16, 0
      %p111 = por %p109, %p110
      %p112 = scmp.le.s32.totalorder 1, %s10
      %p113 = scmp.lt.s32.totalorder %s10, 6
      %p114 = pnand %p112, %p113
      %p115 = pneg %p114
      // Predicated region
      $region9: #{tpu_custom_call.1} parent=5 // pred_check
        _
      $region10: #{tpu_custom_call.1} parent=5 // pred_check_branch
        %117 = sbr.rel (%p114) target = $region12
      $region11: #{tpu_custom_call.1} parent=5 // pred_region
        %s118 = ssub.s32 %s10, 1
        // Predicated region
        $region13: #{tpu_custom_call.1} parent=11 // pred_check
          %p119 = pneg %p83
        $region14: #{tpu_custom_call.1} parent=11 // pred_check_branch
          %121 = sbr.rel (%p119) target = $region16
        $region15: #{tpu_custom_call.1} parent=11 // pred_region
          _
        $region16: #{tpu_custom_call.1} parent=11 // pred_fallthru
          _
      $region12: #{tpu_custom_call.1} parent=5 // pred_fallthru
        _
      %p122 = scmp.lt.s32.totalorder %s10, 5
      // Predicated region
      $region17: #{tpu_custom_call.1} parent=5 // pred_check
        %p123 = pneg %p122
      $region18: #{tpu_custom_call.1} parent=5 // pred_check_branch
        %125 = sbr.rel (%p123) target = $region20
      $region19: #{tpu_custom_call.1} parent=5 // pred_region
        // Predicated region
        $region21: #{tpu_custom_call.1} parent=19 // pred_check
          %p126 = pneg %p30
        $region22: #{tpu_custom_call.1} parent=19 // pred_check_branch
          %128 = sbr.rel (%p126) target = $region24
        $region23: #{tpu_custom_call.1} parent=19 // pred_region
          %p129 = scmp.lt.s32.totalorder %s10, 4
          %s130 = scalar_select %p129, %s10, 4
          %s131 = scalar_lea.vmem %s0, %s130
        $region24: #{tpu_custom_call.1} parent=19 // pred_fallthru
          _
        // Predicated region
        $region25: #{tpu_custom_call.1} parent=19 // pred_check
          %p132 = pneg %p56
        $region26: #{tpu_custom_call.1} parent=19 // pred_check_branch
          %134 = sbr.rel (%p132) target = $region28
        $region27: #{tpu_custom_call.1} parent=19 // pred_region
          %s135 = smul.u32 16, %s10
          %p136 = scmp.lt.s32.totalorder %s135, 79
          %s137 = scalar_select %p136, %s135, 79
          %s138 = smul.addr %s137, 8
          %s139 = scalar_lea.vmem %s1, %s138
          %s140 = smul.u32 16, %s10
        $region28: #{tpu_custom_call.1} parent=19 // pred_fallthru
          _
      $region20: #{tpu_custom_call.1} parent=5 // pred_fallthru
        _
      %p141 = scmp.le.s32.totalorder 1, %s10
      %p142 = scmp.lt.s32.totalorder %s10, 6
      %p143 = pnand %p141, %p142
      %p144 = pneg %p143
      // Predicated region
      $region29: #{tpu_custom_call.1} parent=5 // pred_check
        _
      $region30: #{tpu_custom_call.1} parent=5 // pred_check_branch
        %146 = sbr.rel (%p143) target = $region32
      $region31: #{tpu_custom_call.1} parent=5 // pred_region
        %s147 = ssub.s32 %s10, 1
        %p148 = scmp.lt.s32.totalorder %s15, 4
        %s149 = scalar_select %p148, %s15, 4
        %s150 = scalar_lea.vmem %s0, %s149
        %p151 = pneg %p36
        %p152 = pneg %p33
        %s153 = smul.u32 16, %s15
        %p154 = scmp.lt.s32.totalorder %s153, 79
        %s155 = scalar_select %p154, %s153, 79
        %s156 = smul.addr %s155, 8
        %s157 = scalar_lea.vmem %s1, %s156
        %p158 = pneg %p62
        %p159 = pneg %p59
        %p160 = pneg %p83
        %p161 = pneg %p80
        %p162 = pneg %p104
        %p163 = pneg %p101
        %p164 = scmp.lt.s32.totalorder %s15, 4
        %s165 = scalar_select %p164, %s15, 4
        %s166 = scalar_lea.vmem %s0, %s165
        %s167 = smul.u32 16, %s15
        %p168 = scmp.lt.s32.totalorder %s167, 79
        %s169 = scalar_select %p168, %s167, 79
        %s170 = smul.addr %s169, 8
        %s171 = scalar_lea.vmem %s1, %s170
        %s172 = smul.u32 16, %s15
        %p173 = scmp.eq.s32.totalorder %s15, 0
        // Predicated region
        $region33: #{tpu_custom_call.1} parent=31 // pred_check
          %p174 = pneg %p173
        $region34: #{tpu_custom_call.1} parent=31 // pred_check_branch
          %176 = sbr.rel (%p174) target = $region36
        $region35: #{tpu_custom_call.1} parent=31 // pred_region
          %vm177 = vcmask 7168
          %178 = vst.msk [vmem:[#allocation2] sm:$0xff] %vm177, -1e+30
          %179 = vst.msk [vmem:[#allocation3] sm:$0xff] %vm177, 0.0
          %vm180 = vcmask 261120
          %181 = vst.msk [vmem:[#allocation4] sm:$0xff] %vm180, 0.0
        $region36: #{tpu_custom_call.1} parent=31 // pred_fallthru
          _
        %v182 = vld [vmem:[%s171] sm:$0xff]
        %v183 = vld [vmem:[%s171 + $0x8] sm:$0xff]
        %v184 = vld [vmem:[%s171 + $0x10] sm:$0xff]
        %v185 = vld [vmem:[%s171 + $0x18] sm:$0xff]
        %v186 = vld [vmem:[%s171 + $0x20] sm:$0xff]
        %v187 = vld [vmem:[%s171 + $0x28] sm:$0xff]
        %v188 = vld [vmem:[%s171 + $0x30] sm:$0xff]
        %v189 = vld [vmem:[%s171 + $0x38] sm:$0xff]
        %v190 = vld [vmem:[%s171 + $0x40] sm:$0xff]
        %v191 = vld [vmem:[%s171 + $0x48] sm:$0xff]
        %v192 = vld [vmem:[%s171 + $0x50] sm:$0xff]
        %v193 = vld [vmem:[%s171 + $0x58] sm:$0xff]
        %v194 = vld [vmem:[%s171 + $0x60] sm:$0xff]
        %v195 = vld [vmem:[%s171 + $0x68] sm:$0xff]
        %v196 = vld [vmem:[%s171 + $0x70] sm:$0xff]
        %v197 = vld [vmem:[%s171 + $0x78] sm:$0xff]
        %v198 = vld [vmem:[%s2] sm:$0xff]
        %vm199 = vcmask 261120
        %v201 = vsel %vm199, %v198, 0
        %v204 = vsel %vm199, %v182, 0
        %v207 = vsel %vm199, %v183, 0
        %v210 = vsel %vm199, %v184, 0
        %v213 = vsel %vm199, %v185, 0
        %v216 = vsel %vm199, %v186, 0
        %v219 = vsel %vm199, %v187, 0
        %v222 = vsel %vm199, %v188, 0
        %v225 = vsel %vm199, %v189, 0
        %v228 = vsel %vm199, %v190, 0
        %v231 = vsel %vm199, %v191, 0
        %v234 = vsel %vm199, %v192, 0
        %v237 = vsel %vm199, %v193, 0
        %v240 = vsel %vm199, %v194, 0
        %v243 = vsel %vm199, %v195, 0
        %v246 = vsel %vm199, %v196, 0
        %v249 = vsel %vm199, %v197, 0
        %251 = vmatprep.subr.mxu0 0.0
        %252 = vmatpush1.xpose.msra.mxu0 %v204
        %253 = vmatprep.subr.mxu0 0.0
        %254 = vmatpush1.xpose.msra.mxu0 %v207
        %255 = vmatprep.subr.mxu0 0.0
        %256 = vmatpush1.xpose.msra.mxu0 %v210
        %257 = vmatprep.subr.mxu0 0.0
        %258 = vmatpush1.xpose.msra.mxu0 %v213
        %259 = vmatprep.subr.mxu0 0.0
        %260 = vmatpush1.xpose.msra.mxu0 %v216
        %261 = vmatprep.subr.mxu0 0.0
        %262 = vmatpush1.xpose.msra.mxu0 %v219
        %263 = vmatprep.subr.mxu0 0.0
        %264 = vmatpush1.xpose.msra.mxu0 %v222
        %265 = vmatprep.subr.mxu0 0.0
        %266 = vmatpush1.xpose.msra.mxu0 %v225
        %267 = vmatprep.subr.mxu0 0.0
        %268 = vmatpush1.xpose.msra.mxu0 %v228
        %269 = vmatprep.subr.mxu0 0.0
        %270 = vmatpush1.xpose.msra.mxu0 %v231
        %271 = vmatprep.subr.mxu0 0.0
        %272 = vmatpush1.xpose.msra.mxu0 %v234
        %273 = vmatprep.subr.mxu0 0.0
        %274 = vmatpush1.xpose.msra.mxu0 %v237
        %275 = vmatprep.subr.mxu0 0.0
        %276 = vmatpush1.xpose.msra.mxu0 %v240
        %277 = vmatprep.subr.mxu0 0.0
        %278 = vmatpush1.xpose.msra.mxu0 %v243
        %279 = vmatprep.subr.mxu0 0.0
        %280 = vmatpush1.xpose.msra.mxu0 %v246
        %281 = vmatprep.subr.mxu0 0.0
        %282 = vmatpush1.xpose.msra.mxu0 %v249
        %283 = vmatprep.subr.mxu0 0.0
        %284 = vmatpush1.xpose.msra.mxu0 0.0
        %285 = vmatprep.subr.mxu0 0.0
        %286 = vmatpush1.xpose.msra.mxu0 0.0
        %287 = vmatprep.subr.mxu0 0.0
        %288 = vmatpush1.xpose.msra.mxu0 0.0
        %289 = vmatprep.subr.mxu0 0.0
        %290 = vmatpush1.xpose.msra.mxu0 0.0
        %291 = vmatprep.subr.mxu0 0.0
        %292 = vmatpush1.xpose.msra.mxu0 0.0
        %293 = vmatprep.subr.mxu0 0.0
        %294 = vmatpush1.xpose.msra.mxu0 0.0
        %295 = vmatprep.subr.mxu0 0.0
        %296 = vmatpush1.xpose.msra.mxu0 0.0
        %297 = vmatprep.subr.mxu0 0.0
        %298 = vmatpush1.xpose.msra.mxu0 0.0
        %299 = vmatprep.subr.mxu0 0.0
        %300 = vmatpush1.xpose.msra.mxu0 0.0
        %301 = vmatprep.subr.mxu0 0.0
        %302 = vmatpush1.xpose.msra.mxu0 0.0
        %303 = vmatprep.subr.mxu0 0.0
        %304 = vmatpush1.xpose.msra.mxu0 0.0
        %305 = vmatprep.subr.mxu0 0.0
        %306 = vmatpush1.xpose.msra.mxu0 0.0
        %307 = vmatprep.subr.mxu0 0.0
        %308 = vmatpush1.xpose.msra.mxu0 0.0
        %309 = vmatprep.subr.mxu0 0.0
        %310 = vmatpush1.xpose.msra.mxu0 0.0
        %311 = vmatprep.subr.mxu0 0.0
        %312 = vmatpush1.xpose.msra.mxu0 0.0
        %313 = vmatprep.subr.mxu0 0.0
        %314 = vmatpush1.xpose.msra.mxu0 0.0
        %315 = vmatprep.mubr.f32.mxu0 0.0
        %316 = vmatmul.mubr.f32.gmra.mrb[0].mxu0 %v201
        %v317 = vpop.f32.mrb[0].mxu0
        %v318 = vadd.f32 0.0, %v317
        %v319 = vpop.f32.mrb[0].mxu0
        %320 = vdwg.mxu0
        %v321 = vlaneseq
        %v322 = vshrl.u32 %v321, 7
        %v323 = vld [vmem:[%s166] sm:$0x1]
        %v324 = vlaneseq
        %v325 = vshrl.u32 %v324, 7
        %v326 = vsub.s32 0, %v325
        %v327 = vrot.slane %v323, %v326
        %vm328 = vcmp.eq.s32.totalorder %v327, %v322
        %v329 = vld [vmem:[#allocation2] sm:$0xff]
        %v330 = vlaneseq
        %v331 = vshrl.u32 %v330, 7
        %v332 = vsub.s32 0, %v331
        %v333 = vrot.slane %v318, %v332
        %v334 = vsel %vm328, %v333, -1e+30
        %335 = vmax.xlane.f32.xlu0 %v334
        %v336 = vpop.xlane.xlu0 %335
        %v337 = vmax.f32 %v329, %v336
        %v338 = vsub.f32 %v329, %v337
        %v339 = vmul.f32 %v338, 1.442695
        %v340 = vpow.pop %v339
        %342 = vset.pattern.permute.xlu0 0
        %343 = vperm.xlu0 %342, %v337
        %v344 = vpop.permute.xlu0 %343
        %v346 = vsub.f32 %v333, %v344
        %v347 = vmul.f32 %v346, 1.442695
        %v348 = vpow.pop %v347
        %v349 = vsel %vm328, %v348, 0.0
        %vm350 = vcmask 7168
        %351 = vst.msk [vmem:[#allocation2] sm:$0xff] %vm350, %v337
        %v352 = vld [vmem:[#allocation3] sm:$0xff]
        %v353 = vmul.f32 %v340, %v352
        %354 = vadd.xlane.f32.xlu0 %v349
        %v355 = vpop.xlane.xlu0 %354
        %v356 = vadd.f32 %v353, %v355
        %357 = vst.msk [vmem:[#allocation3] sm:$0xff] %vm350, %v356
        %v358 = vld [vmem:[#allocation4] sm:$0xff]
        %360 = vset.pattern.permute.xlu0 0
        %361 = vperm.xlu0 %360, %v340
        %v362 = vpop.permute.xlu0 %361
        %v364 = vmul.f32 %v362, %v358
        %365 = vmatprep.subr.mxu0 0.0
        %366 = vmatpush1.msra.mxu0 %v182
        %367 = vmatprep.subr.mxu0 0.0
        %368 = vmatpush1.msra.mxu0 %v183
        %369 = vmatprep.subr.mxu0 0.0
        %370 = vmatpush1.msra.mxu0 %v184
        %371 = vmatprep.subr.mxu0 0.0
        %372 = vmatpush1.msra.mxu0 %v185
        %373 = vmatprep.subr.mxu0 0.0
        %374 = vmatpush1.msra.mxu0 %v186
        %375 = vmatprep.subr.mxu0 0.0
        %376 = vmatpush1.msra.mxu0 %v187
        %377 = vmatprep.subr.mxu0 0.0
        %378 = vmatpush1.msra.mxu0 %v188
        %379 = vmatprep.subr.mxu0 0.0
        %380 = vmatpush1.msra.mxu0 %v189
        %381 = vmatprep.subr.mxu0 0.0
        %382 = vmatpush1.msra.mxu0 %v190
        %383 = vmatprep.subr.mxu0 0.0
        %384 = vmatpush1.msra.mxu0 %v191
        %385 = vmatprep.subr.mxu0 0.0
        %386 = vmatpush1.msra.mxu0 %v192
        %387 = vmatprep.subr.mxu0 0.0
        %388 = vmatpush1.msra.mxu0 %v193
        %389 = vmatprep.subr.mxu0 0.0
        %390 = vmatpush1.msra.mxu0 %v194
        %391 = vmatprep.subr.mxu0 0.0
        %392 = vmatpush1.msra.mxu0 %v195
        %393 = vmatprep.subr.mxu0 0.0
        %394 = vmatpush1.msra.mxu0 %v196
        %395 = vmatprep.subr.mxu0 0.0
        %396 = vmatpush1.msra.mxu0 %v197
        %397 = vmatprep.subr.mxu0 0.0
        %398 = vmatpush1.msra.mxu0 0.0
        %399 = vmatprep.subr.mxu0 0.0
        %400 = vmatpush1.msra.mxu0 0.0
        %401 = vmatprep.subr.mxu0 0.0
        %402 = vmatpush1.msra.mxu0 0.0
        %403 = vmatprep.subr.mxu0 0.0
        %404 = vmatpush1.msra.mxu0 0.0
        %405 = vmatprep.subr.mxu0 0.0
        %406 = vmatpush1.msra.mxu0 0.0
        %407 = vmatprep.subr.mxu0 0.0
        %408 = vmatpush1.msra.mxu0 0.0
        %409 = vmatprep.subr.mxu0 0.0
        %410 = vmatpush1.msra.mxu0 0.0
        %411 = vmatprep.subr.mxu0 0.0
        %412 = vmatpush1.msra.mxu0 0.0
        %413 = vmatprep.subr.mxu0 0.0
        %414 = vmatpush1.msra.mxu0 0.0
        %415 = vmatprep.subr.mxu0 0.0
        %416 = vmatpush1.msra.mxu0 0.0
        %417 = vmatprep.subr.mxu0 0.0
        %418 = vmatpush1.msra.mxu0 0.0
        %419 = vmatprep.subr.mxu0 0.0
        %420 = vmatpush1.msra.mxu0 0.0
        %421 = vmatprep.subr.mxu0 0.0
        %422 = vmatpush1.msra.mxu0 0.0
        %423 = vmatprep.subr.mxu0 0.0
        %424 = vmatpush1.msra.mxu0 0.0
        %425 = vmatprep.subr.mxu0 0.0
        %426 = vmatpush1.msra.mxu0 0.0
        %427 = vmatprep.subr.mxu0 0.0
        %428 = vmatpush1.msra.mxu0 0.0
        %429 = vmatprep.mubr.f32.mxu0 0.0
        %430 = vmatmul.mubr.f32.gmra.mrb[0].mxu0 %v349
        %v431 = vpop.f32.mrb[0].mxu0
        %v432 = vadd.f32 0.0, %v431
        %v433 = vpop.f32.mrb[0].mxu0
        %434 = vdwg.mxu0
        %v435 = vadd.f32 %v364, %v432
        %436 = vst.msk [vmem:[#allocation4] sm:$0xff] %vm199, %v435
        %p437 = scmp.eq.s32.totalorder %s15, 4
        // Predicated region
        $region37: #{tpu_custom_call.1} parent=31 // pred_check
          %p438 = pneg %p437
        $region38: #{tpu_custom_call.1} parent=31 // pred_check_branch
          %440 = sbr.rel (%p438) target = $region40
        $region39: #{tpu_custom_call.1} parent=31 // pred_region
          %v441 = vld [vmem:[#allocation3] sm:$0xff]
          %vm442 = vcmp.gt.f32.partialorder %v441, 0.0
          %v443 = vrcp.pop %v441
          %v444 = vmul.f32 1.0, %v443
          %v445 = vsel %vm442, %v444, 0.0
          %v446 = vld [vmem:[#allocation4] sm:$0xff]
          %448 = vset.pattern.permute.xlu0 0
          %449 = vperm.xlu0 %448, %v445
          %v450 = vpop.permute.xlu0 %449
          %v452 = vmul.f32 %v446, %v450
          %453 = vst.msk [vmem:[#allocation4] sm:$0xff] %vm199, %v452
        $region40: #{tpu_custom_call.1} parent=31 // pred_fallthru
          _
        // Predicated region
        $region41: #{tpu_custom_call.1} parent=31 // pred_check
          %p454 = pneg %p101
        $region42: #{tpu_custom_call.1} parent=31 // pred_check_branch
          %456 = sbr.rel (%p454) target = $region44
        $region43: #{tpu_custom_call.1} parent=31 // pred_region
          %s458 = ssub.s32 128, 128
          %459 = vsyncadd [#allocation5], %s458
          %s461 = sshll.u32 [#allocation4], 4
          %s462 = int_to_ptr.vmem [resolvable:$true] %s461
          %464 = dma.vmem_to_hbm [thread:$0]  %s462, 128, %s3, [#allocation5]
        $region44: #{tpu_custom_call.1} parent=31 // pred_fallthru
          _
        // Predicated region
        $region45: #{tpu_custom_call.1} parent=31 // pred_check
          %p465 = pneg %p101
        $region46: #{tpu_custom_call.1} parent=31 // pred_check_branch
          %467 = sbr.rel (%p465) target = $region48
        $region47: #{tpu_custom_call.1} parent=31 // pred_region
          %468 = dma.done [#allocation5], 128
        $region48: #{tpu_custom_call.1} parent=31 // pred_fallthru
          _
      $region32: #{tpu_custom_call.1} parent=5 // pred_fallthru
        _
      %p469 = scmp.le.s32.totalorder 2, %s10
      // Predicated region
      $region49: #{tpu_custom_call.1} parent=5 // pred_check
        %p470 = pneg %p469
      $region50: #{tpu_custom_call.1} parent=5 // pred_check_branch
        %472 = sbr.rel (%p470) target = $region52
      $region51: #{tpu_custom_call.1} parent=5 // pred_region
        %s473 = ssub.s32 %s10, 2
      $region52: #{tpu_custom_call.1} parent=5 // pred_fallthru
        _
    $region6: #{tpu_custom_call.1} parent=1 // loop_footer
      %s14 = sadd.s32 1, %s10
    $region7: #{tpu_custom_call.1} parent=1 // loop_footer_branch
      %9 = sbr.rel target = $region3
    $region8: #{tpu_custom_call.1} parent=1 // loop_exit
      _
    %474 = vsyncpa [#allocation5], 1
    %s475 = scalar_lea.sflag [#allocation5], 1
    %476 = vsyncpa %s475, 1

</llo_original>
